<compile_context>
chip_gen: v6e
topology: v6e:2x2x1
jax: 0.10.0
libtpu: 0.0.40
codegen_flags: <defaults>
</compile_context>

<pallas_src>
import jax
import jax.numpy as jnp
from jax.experimental import pallas as pl
from jax.experimental.pallas import tpu as pltpu


def _round_up(x, m):
    return ((x + m - 1) // m) * m


def head_kernel(h_ref, m_ref, inv_ref, lnw_ref, lnb_ref, wt_ref, b_ref,
                out_ref, acc_ref):
    # h_ref  : [TB, TS, H]  activation tile (native dtype)
    # m_ref  : [TB, TS, 1]  attention-mask tile (f32)
    # inv_ref: [TB, 1]      precomputed 1 / max(sum(mask), 1)
    # lnw/lnb: [1, H]       LayerNorm weight / bias
    # wt_ref : [H, C]       Linear weight, pre-transposed (torch weight is [C, H])
    # b_ref  : [1, C]       Linear bias
    # out_ref: [TB, C]
    # acc_ref: [TB, H] f32  masked-sum accumulator across S chunks
    s = pl.program_id(1)

    @pl.when(s == 0)
    def _():
        acc_ref[...] = jnp.zeros_like(acc_ref)

    h = h_ref[...].astype(jnp.float32)          # [TB, TS, H]
    m = m_ref[...].astype(jnp.float32)          # [TB, TS, 1]
    acc_ref[...] += jnp.sum(h * m, axis=1)      # masked partial sum -> [TB, H]

    @pl.when(s == pl.num_programs(1) - 1)
    def _():
        pooled = acc_ref[...] * inv_ref[...]    # masked mean, [TB, H]

        # LayerNorm over hidden axis (torch default eps = 1e-5), stats in f32.
        mu = jnp.mean(pooled, axis=-1, keepdims=True)
        var = jnp.mean(jnp.square(pooled - mu), axis=-1, keepdims=True)
        normed = (pooled - mu) * jax.lax.rsqrt(var + 1e-5)
        normed = normed * lnw_ref[...] + lnb_ref[...]

        # Linear projection H -> C (single M=TB matmul on the MXU).
        logits = jnp.dot(normed, wt_ref[...],
                         preferred_element_type=jnp.float32) + b_ref[...]
        out_ref[...] = logits.astype(out_ref.dtype)


def head_forward(hidden_states, attention_mask, ln_w, ln_b, lin_w, lin_b):
    """hidden_states: [B, S, H] (f32 or bf16), attention_mask: [B, S] numeric,
    ln_w/ln_b: [H], lin_w: [C, H] (torch Linear layout), lin_b: [C]."""
    B, S, H = hidden_states.shape
    C = lin_w.shape[0]
    itemsize = jnp.dtype(hidden_states.dtype).itemsize

    # ---- tile sizing -------------------------------------------------------
    # TB batch rows per step (multiple of 8 for full sublane use).
    TB = min(max(8, _round_up(B, 8)), 128)
    # Per-tile streaming budget ~6 MiB so the double-buffered pipeline sits
    # comfortably inside 32 MiB scoped VMEM (and well under v7x's 64 MiB).
    budget = 6 * 1024 * 1024
    max_ts = max(8, (budget // max(1, TB * H * itemsize)) // 8 * 8)
    TS = min(_round_up(S, 8), max_ts)
    B_pad = _round_up(B, TB)
    S_pad = _round_up(S, TS)

    # ---- host-side prep (no upcast of the big activation tensor) -----------
    mask_f = attention_mask.astype(jnp.float32)
    inv_denom = 1.0 / jnp.maximum(mask_f.sum(axis=1, keepdims=True), 1.0)  # [B, 1]

    h = hidden_states
    m3 = mask_f.reshape(B, S, 1)
    if B_pad != B or S_pad != S:
        h = jnp.pad(h, ((0, B_pad - B), (0, S_pad - S), (0, 0)))
        m3 = jnp.pad(m3, ((0, B_pad - B), (0, S_pad - S), (0, 0)))
    if B_pad != B:
        inv_denom = jnp.pad(inv_denom, ((0, B_pad - B), (0, 0)),
                            constant_values=1.0)

    lnw2 = ln_w.astype(jnp.float32).reshape(1, H)
    lnb2 = ln_b.astype(jnp.float32).reshape(1, H)
    w_t = lin_w.astype(jnp.float32).T                # [H, C]
    b2 = lin_b.astype(jnp.float32).reshape(1, C)

    grid = (B_pad // TB, S_pad // TS)

    # Explicit VMEM budget: 2x-buffered streaming tiles + resident params/out/scratch.
    stream_bytes = TB * TS * (H * itemsize + 4)                 # act tile + mask tile
    resident_bytes = 4 * (H * C + 2 * H + C + TB * (C + H + 1))
    vmem_limit = int(min(64 * 1024 * 1024,
                         max(32 * 1024 * 1024,
                             4 * stream_bytes + 2 * resident_bytes + (4 << 20))))

    out = pl.pallas_call(
        head_kernel,
        out_shape=jax.ShapeDtypeStruct((B_pad, C), jnp.float32),
        grid_spec=pltpu.PrefetchScalarGridSpec(
            num_scalar_prefetch=0,
            grid=grid,
            in_specs=[
                pl.BlockSpec((TB, TS, H), lambda b, s: (b, s, 0)),  # activations
                pl.BlockSpec((TB, TS, 1), lambda b, s: (b, s, 0)),  # mask
                pl.BlockSpec((TB, 1), lambda b, s: (b, 0)),         # 1/denom
                pl.BlockSpec((1, H), lambda b, s: (0, 0)),          # LN weight
                pl.BlockSpec((1, H), lambda b, s: (0, 0)),          # LN bias
                pl.BlockSpec((H, C), lambda b, s: (0, 0)),          # Linear W^T
                pl.BlockSpec((1, C), lambda b, s: (0, 0)),          # Linear bias
            ],
            out_specs=pl.BlockSpec((TB, C), lambda b, s: (b, 0)),
            scratch_shapes=[pltpu.VMEM((TB, H), jnp.float32)],
        ),
        compiler_params=pltpu.CompilerParams(
            dimension_semantics=("parallel", "arbitrary"),
            vmem_limit_bytes=vmem_limit,
        ),
    )(h, m3, inv_denom, lnw2, lnb2, w_t, b2)

    return out[:B]   # drop padded batch rows (their outputs are finite garbage)


def reference_forward(hidden_states, attention_mask, ln_w, ln_b, lin_w, lin_b):
    m = attention_mask.astype(jnp.float32)
    denom = jnp.maximum(m.sum(axis=1, keepdims=True), 1.0)
    pooled = jnp.sum(hidden_states.astype(jnp.float32) * m[:, :, None], axis=1) / denom
    mu = pooled.mean(axis=-1, keepdims=True)
    var = ((pooled - mu) ** 2).mean(axis=-1, keepdims=True)
    normed = (pooled - mu) * jax.lax.rsqrt(var + 1e-5) * ln_w[None, :] + ln_b[None, :]
    return normed @ lin_w.T + lin_b[None, :]


if __name__ == "__main__":
    B, S, H, C = 2, 8, 32, 4

    key = jax.random.PRNGKey(0)
    k_h, k_w = jax.random.split(key)

    hidden_states = jax.random.normal(k_h, (B, S, H), dtype=jnp.float32)
    # attention mask: second example has 3 padding positions
    attention_mask = jnp.array(
        [[1] * S, [1] * (S - 3) + [0] * 3], dtype=jnp.int32
    )

    # Parameter init mirrors Head._init_weights:
    #   Linear: weight ~ N(0, 0.02), bias = 0 ; LayerNorm: weight = 1, bias = 0
    lin_w = 0.02 * jax.random.normal(k_w, (C, H), dtype=jnp.float32)
    lin_b = jnp.zeros((C,), dtype=jnp.float32)
    ln_w = jnp.ones((H,), dtype=jnp.float32)
    ln_b = jnp.zeros((H,), dtype=jnp.float32)

    out = head_forward(hidden_states, attention_mask, ln_w, ln_b, lin_w, lin_b)
    out = jax.block_until_ready(out)

    ref = reference_forward(hidden_states, attention_mask, ln_w, ln_b, lin_w, lin_b)
    assert out.shape == (B, C)
    assert jnp.allclose(out, ref, atol=1e-5, rtol=1e-5), (out, ref)

    print("KERNEL_OK")
</pallas_src>

<mosaic_0001>
module attributes {stable_mosaic.version = 11 : i64} {
  func.func @head_kernel(%arg0: i32, %arg1: i32, %arg2: memref<8x8x32xf32, #tpu.memory_space<vmem>>, %arg3: memref<8x8x1xf32, #tpu.memory_space<vmem>>, %arg4: memref<8x1xf32, #tpu.memory_space<vmem>>, %arg5: memref<1x32xf32, #tpu.memory_space<vmem>>, %arg6: memref<1x32xf32, #tpu.memory_space<vmem>>, %arg7: memref<32x4xf32, #tpu.memory_space<vmem>>, %arg8: memref<1x4xf32, #tpu.memory_space<vmem>>, %arg9: memref<8x4xf32, #tpu.memory_space<vmem>>, %arg10: memref<8x32xf32, #tpu.memory_space<vmem>>) attributes {dimension_semantics = [#tpu.dimension_semantics<parallel>, #tpu.dimension_semantics<arbitrary>], iteration_bounds = array<i64: 1, 1>, scalar_prefetch = 0 : i64, scratch_operands = 1 : i64, tpu.core_type = #tpu.core_type<tc>, window_params = [{transform_indices = @transform_0, window_bounds = array<i64: 8, 8, 32>}, {transform_indices = @transform_1, window_bounds = array<i64: 8, 8, 1>}, {transform_indices = @transform_2, window_bounds = array<i64: 8, 1>}, {pipeline_mode = #tpu.pipeline_mode<synchronous>, transform_indices = @transform_3, window_bounds = array<i64: 1, 32>}, {pipeline_mode = #tpu.pipeline_mode<synchronous>, transform_indices = @transform_4, window_bounds = array<i64: 1, 32>}, {pipeline_mode = #tpu.pipeline_mode<synchronous>, transform_indices = @transform_5, window_bounds = array<i64: 32, 4>}, {pipeline_mode = #tpu.pipeline_mode<synchronous>, transform_indices = @transform_6, window_bounds = array<i64: 1, 4>}, {transform_indices = @transform_7, window_bounds = array<i64: 8, 4>}]} {
    %c0_i32 = arith.constant 0 : i32
    %0 = arith.cmpi eq, %arg1, %c0_i32 : i32
    %1 = arith.extui %0 : i1 to i32
    %c0_i32_0 = arith.constant 0 : i32
    %2 = arith.cmpi ne, %1, %c0_i32_0 : i32
    scf.if %2 {
      %cst_12 = arith.constant 0.000000e+00 : f32
      %14 = vector.broadcast %cst_12 : f32 to vector<8x32xf32>
      %c0_13 = arith.constant 0 : index
      %c0_14 = arith.constant 0 : index
      %15 = vector.load %arg10[%c0_13, %c0_14] : memref<8x32xf32, #tpu.memory_space<vmem>>, vector<8x32xf32>
      tpu.vector_store %arg10[%c0_13, %c0_14], %14 {strides = array<i32>} : memref<8x32xf32, #tpu.memory_space<vmem>>, vector<8x32xf32>,
    } else {
    }
    %c0 = arith.constant 0 : index
    %c0_1 = arith.constant 0 : index
    %c0_2 = arith.constant 0 : index
    %3 = vector.load %arg2[%c0, %c0_1, %c0_2] : memref<8x8x32xf32, #tpu.memory_space<vmem>>, vector<8x8x32xf32>
    %c0_3 = arith.constant 0 : index
    %c0_4 = arith.constant 0 : index
    %c0_5 = arith.constant 0 : index
    %4 = vector.load %arg3[%c0_3, %c0_4, %c0_5] : memref<8x8x1xf32, #tpu.memory_space<vmem>>, vector<8x8x1xf32>
    %c0_6 = arith.constant 0 : index
    %c0_7 = arith.constant 0 : index
    %5 = vector.load %arg10[%c0_6, %c0_7] : memref<8x32xf32, #tpu.memory_space<vmem>>, vector<8x32xf32>
    %6 = vector.broadcast %4 : vector<8x8x1xf32> to vector<8x8x32xf32>
    %7 = arith.mulf %3, %6 : vector<8x8x32xf32>
    %cst = arith.constant dense<0.000000e+00> : vector<8x32xf32>
    %8 = vector.multi_reduction <add>, %7, %cst [1] : vector<8x8x32xf32> to vector<8x32xf32>
    %9 = arith.addf %5, %8 : vector<8x32xf32>
    %c0_8 = arith.constant 0 : index
    %c0_9 = arith.constant 0 : index
    %10 = vector.load %arg10[%c0_8, %c0_9] : memref<8x32xf32, #tpu.memory_space<vmem>>, vector<8x32xf32>
    tpu.vector_store %arg10[%c0_8, %c0_9], %9 {strides = array<i32>} : memref<8x32xf32, #tpu.memory_space<vmem>>, vector<8x32xf32>,
    %c0_i32_10 = arith.constant 0 : i32
    %11 = arith.cmpi eq, %arg1, %c0_i32_10 : i32
    %12 = arith.extui %11 : i1 to i32
    %c0_i32_11 = arith.constant 0 : i32
    %13 = arith.cmpi ne, %12, %c0_i32_11 : i32
    scf.if %13 {
      %c0_12 = arith.constant 0 : index
      %c0_13 = arith.constant 0 : index
      %14 = vector.load %arg10[%c0_12, %c0_13] : memref<8x32xf32, #tpu.memory_space<vmem>>, vector<8x32xf32>
      %c0_14 = arith.constant 0 : index
      %c0_15 = arith.constant 0 : index
      %15 = vector.load %arg4[%c0_14, %c0_15] : memref<8x1xf32, #tpu.memory_space<vmem>>, vector<8x1xf32>
      %16 = vector.broadcast %15 : vector<8x1xf32> to vector<8x32xf32>
      %17 = arith.mulf %14, %16 : vector<8x32xf32>
      %cst_16 = arith.constant dense<0.000000e+00> : vector<8xf32>
      %18 = vector.multi_reduction <add>, %17, %cst_16 [1] : vector<8x32xf32> to vector<8xf32>
      %19 = vector.shape_cast %18 : vector<8xf32> to vector<8x1xf32>
      %cst_17 = arith.constant 3.200000e+01 : f32
      %20 = vector.broadcast %cst_17 : f32 to vector<8x1xf32>
      %21 = arith.divf %19, %20 : vector<8x1xf32>
      %22 = vector.broadcast %21 : vector<8x1xf32> to vector<8x32xf32>
      %23 = arith.subf %17, %22 : vector<8x32xf32>
      %24 = arith.mulf %23, %23 : vector<8x32xf32>
      %cst_18 = arith.constant dense<0.000000e+00> : vector<8xf32>
      %25 = vector.multi_reduction <add>, %24, %cst_18 [1] : vector<8x32xf32> to vector<8xf32>
      %26 = vector.shape_cast %25 : vector<8xf32> to vector<8x1xf32>
      %cst_19 = arith.constant 3.200000e+01 : f32
      %27 = vector.broadcast %cst_19 : f32 to vector<8x1xf32>
      %28 = arith.divf %26, %27 : vector<8x1xf32>
      %29 = vector.broadcast %21 : vector<8x1xf32> to vector<8x32xf32>
      %30 = arith.subf %17, %29 : vector<8x32xf32>
      %cst_20 = arith.constant 9.99999974E-6 : f32
      %31 = vector.broadcast %cst_20 : f32 to vector<8x1xf32>
      %32 = arith.addf %28, %31 : vector<8x1xf32>
      %33 = math.rsqrt %32 : vector<8x1xf32>
      %34 = vector.broadcast %33 : vector<8x1xf32> to vector<8x32xf32>
      %35 = arith.mulf %30, %34 : vector<8x32xf32>
      %c0_21 = arith.constant 0 : index
      %c0_22 = arith.constant 0 : index
      %36 = vector.load %arg5[%c0_21, %c0_22] : memref<1x32xf32, #tpu.memory_space<vmem>>, vector<1x32xf32>
      %37 = vector.broadcast %36 : vector<1x32xf32> to vector<8x32xf32>
      %38 = arith.mulf %35, %37 : vector<8x32xf32>
      %c0_23 = arith.constant 0 : index
      %c0_24 = arith.constant 0 : index
      %39 = vector.load %arg6[%c0_23, %c0_24] : memref<1x32xf32, #tpu.memory_space<vmem>>, vector<1x32xf32>
      %40 = vector.broadcast %39 : vector<1x32xf32> to vector<8x32xf32>
      %41 = arith.addf %38, %40 : vector<8x32xf32>
      %c0_25 = arith.constant 0 : index
      %c0_26 = arith.constant 0 : index
      %42 = vector.load %arg7[%c0_25, %c0_26] : memref<32x4xf32, #tpu.memory_space<vmem>>, vector<32x4xf32>
      %cst_27 = arith.constant dense<0.000000e+00> : vector<8x4xf32>
      %43 = tpu.matmul %41, %42, %cst_27 {dimension_numbers = #tpu.dot_dimension_numbers<[1], [0], [0], [1], [0, 0, 1, 1], [], []>} : vector<8x32xf32>, vector<32x4xf32>, vector<8x4xf32> -> vector<8x4xf32>
      %c0_28 = arith.constant 0 : index
      %c0_29 = arith.constant 0 : index
      %44 = vector.load %arg8[%c0_28, %c0_29] : memref<1x4xf32, #tpu.memory_space<vmem>>, vector<1x4xf32>
      %45 = vector.broadcast %44 : vector<1x4xf32> to vector<8x4xf32>
      %46 = arith.addf %43, %45 : vector<8x4xf32>
      %c0_30 = arith.constant 0 : index
      %c0_31 = arith.constant 0 : index
      %47 = vector.load %arg9[%c0_30, %c0_31] : memref<8x4xf32, #tpu.memory_space<vmem>>, vector<8x4xf32>
      tpu.vector_store %arg9[%c0_30, %c0_31], %46 {strides = array<i32>} : memref<8x4xf32, #tpu.memory_space<vmem>>, vector<8x4xf32>,
    } else {
    }
    return
  }
  func.func @transform_0(%arg0: i32, %arg1: i32) -> (i32, i32, i32) {
    %c0_i32 = arith.constant 0 : i32
    %c0_i32_0 = arith.constant 0 : i32
    return %arg0, %arg1, %c0_i32 : i32, i32, i32
  }
  func.func @transform_1(%arg0: i32, %arg1: i32) -> (i32, i32, i32) {
    %c0_i32 = arith.constant 0 : i32
    %c0_i32_0 = arith.constant 0 : i32
    return %arg0, %arg1, %c0_i32 : i32, i32, i32
  }
  func.func @transform_2(%arg0: i32, %arg1: i32) -> (i32, i32) {
    %c0_i32 = arith.constant 0 : i32
    %c0_i32_0 = arith.constant 0 : i32
    return %arg0, %c0_i32 : i32, i32
  }
  func.func @transform_3(%arg0: i32, %arg1: i32) -> (i32, i32) {
    %c0_i32 = arith.constant 0 : i32
    %c0_i32_0 = arith.constant 0 : i32
    %c0_i32_1 = arith.constant 0 : i32
    return %c0_i32, %c0_i32_0 : i32, i32
  }
  func.func @transform_4(%arg0: i32, %arg1: i32) -> (i32, i32) {
    %c0_i32 = arith.constant 0 : i32
    %c0_i32_0 = arith.constant 0 : i32
    %c0_i32_1 = arith.constant 0 : i32
    return %c0_i32, %c0_i32_0 : i32, i32
  }
  func.func @transform_5(%arg0: i32, %arg1: i32) -> (i32, i32) {
    %c0_i32 = arith.constant 0 : i32
    %c0_i32_0 = arith.constant 0 : i32
    %c0_i32_1 = arith.constant 0 : i32
    return %c0_i32, %c0_i32_0 : i32, i32
  }
  func.func @transform_6(%arg0: i32, %arg1: i32) -> (i32, i32) {
    %c0_i32 = arith.constant 0 : i32
    %c0_i32_0 = arith.constant 0 : i32
    %c0_i32_1 = arith.constant 0 : i32
    return %c0_i32, %c0_i32_0 : i32, i32
  }
  func.func @transform_7(%arg0: i32, %arg1: i32) -> (i32, i32) {
    %c0_i32 = arith.constant 0 : i32
    %c0_i32_0 = arith.constant 0 : i32
    return %arg0, %c0_i32 : i32, i32
  }
}

</mosaic_0001>

<llo_original>
// kernel: tpu_custom_call.1
$region0: #{tpu_custom_call.1}
  #allocation0 [shape = 'u32[]', space=smem, size = 0x4, offset = 0x4, fixed_abs, tag = 'smem constant byte address 0x4 - core index']
  #allocation1 [shape = 'u32[144,128]{1,0:T(1,128)}', space=vmem, size = 0x12000, scoped, tag = 'internal scratch']
  #allocation2 [shape = 'f32[8,32]{1,0:T(8,128)}', space=vmem, size = 0x1000, scoped, tag = 'scratch operand']
  %s0 = inlined_call_operand.vmem [shape: f32[8,8,32], index: 0, kind: input, shape index: {}]
  %s1 = inlined_call_operand.vmem [shape: f32[8,8,1], index: 1, kind: input, shape index: {}]
  %s2 = inlined_call_operand.vmem [shape: f32[8,1], index: 2, kind: input, shape index: {}]
  %s3 = inlined_call_operand.vmem [shape: f32[1,32], index: 3, kind: input, shape index: {}]
  %s4 = inlined_call_operand.vmem [shape: f32[1,32], index: 4, kind: input, shape index: {}]
  %s5 = inlined_call_operand.vmem [shape: f32[32,4], index: 5, kind: input, shape index: {}]
  %s6 = inlined_call_operand.vmem [shape: f32[1,4], index: 6, kind: input, shape index: {}]
  %s7 = inlined_call_operand.vmem [shape: f32[8,4], index: 7, kind: output, shape index: {}]
  %s8 = sld [smem:[#allocation0]]
  $region46: #{tpu_custom_call.1} parent=0
    _
  %s10 = ssub.s32 1, %s8
  %s11 = scalar_select 0, %s10, %s8
  // Predicated region
  $region2: #{tpu_custom_call.1} parent=0 // pred_check
    _
  $region3: #{tpu_custom_call.1} parent=0 // pred_check_branch
    %13 = sbr.rel (0) target = $region5
  $region4: #{tpu_custom_call.1} parent=0 // pred_region
    _
  $region5: #{tpu_custom_call.1} parent=0 // pred_fallthru
    _
  // Predicated region
  $region6: #{tpu_custom_call.1} parent=0 // pred_check
    _
  $region7: #{tpu_custom_call.1} parent=0 // pred_check_branch
    %15 = sbr.rel (0) target = $region9
  $region8: #{tpu_custom_call.1} parent=0 // pred_region
    _
  $region9: #{tpu_custom_call.1} parent=0 // pred_fallthru
    _
  // Predicated region
  $region10: #{tpu_custom_call.1} parent=0 // pred_check
    _
  $region11: #{tpu_custom_call.1} parent=0 // pred_check_branch
    %17 = sbr.rel (0) target = $region13
  $region12: #{tpu_custom_call.1} parent=0 // pred_region
    _
  $region13: #{tpu_custom_call.1} parent=0 // pred_fallthru
    _
  // Predicated region
  $region14: #{tpu_custom_call.1} parent=0 // pred_check
    _
  $region15: #{tpu_custom_call.1} parent=0 // pred_check_branch
    %19 = sbr.rel (0) target = $region17
  $region16: #{tpu_custom_call.1} parent=0 // pred_region
    _
  $region17: #{tpu_custom_call.1} parent=0 // pred_fallthru
    _
  // Predicated region
  $region18: #{tpu_custom_call.1} parent=0 // pred_check
    _
  $region19: #{tpu_custom_call.1} parent=0 // pred_check_branch
    %21 = sbr.rel (0) target = $region21
  $region20: #{tpu_custom_call.1} parent=0 // pred_region
    _
  $region21: #{tpu_custom_call.1} parent=0 // pred_fallthru
    _
  // Predicated region
  $region22: #{tpu_custom_call.1} parent=0 // pred_check
    _
  $region23: #{tpu_custom_call.1} parent=0 // pred_check_branch
    %23 = sbr.rel (0) target = $region25
  $region24: #{tpu_custom_call.1} parent=0 // pred_region
    _
  $region25: #{tpu_custom_call.1} parent=0 // pred_fallthru
    _
  // Predicated region
  $region26: #{tpu_custom_call.1} parent=0 // pred_check
    _
  $region27: #{tpu_custom_call.1} parent=0 // pred_check_branch
    %25 = sbr.rel (0) target = $region29
  $region28: #{tpu_custom_call.1} parent=0 // pred_region
    _
  $region29: #{tpu_custom_call.1} parent=0 // pred_fallthru
    _
  %p26 = scmp.eq.s32.totalorder 0, 0
  // Predicated region
  $region30: #{tpu_custom_call.1} parent=0 // pred_check
    %p27 = pneg %p26
  $region31: #{tpu_custom_call.1} parent=0 // pred_check_branch
    %29 = sbr.rel (%p27) target = $region33
  $region32: #{tpu_custom_call.1} parent=0 // pred_region
    %vm30 = vcmask 261120
    %31 = vst.msk [vmem:[#allocation2] sm:$0xff] %vm30, 0.0
  $region33: #{tpu_custom_call.1} parent=0 // pred_fallthru
    _
  %v32 = vld [vmem:[%s0] sm:$0xff]
  %v33 = vld [vmem:[%s0 + $0x8] sm:$0xff]
  %v34 = vld [vmem:[%s0 + $0x10] sm:$0xff]
  %v35 = vld [vmem:[%s0 + $0x18] sm:$0xff]
  %v36 = vld [vmem:[%s0 + $0x20] sm:$0xff]
  %v37 = vld [vmem:[%s0 + $0x28] sm:$0xff]
  %v38 = vld [vmem:[%s0 + $0x30] sm:$0xff]
  %v39 = vld [vmem:[%s0 + $0x38] sm:$0xff]
  %v40 = vld [vmem:[%s1] sm:$0xff]
  %v41 = vld [vmem:[%s1 + $0x8] sm:$0xff]
  %v42 = vld [vmem:[%s1 + $0x10] sm:$0xff]
  %v43 = vld [vmem:[%s1 + $0x18] sm:$0xff]
  %v44 = vld [vmem:[%s1 + $0x20] sm:$0xff]
  %v45 = vld [vmem:[%s1 + $0x28] sm:$0xff]
  %v46 = vld [vmem:[%s1 + $0x30] sm:$0xff]
  %v47 = vld [vmem:[%s1 + $0x38] sm:$0xff]
  %v48 = vld [vmem:[#allocation2] sm:$0xff]
  %50 = vset.pattern.permute.xlu0 0
  %51 = vperm.xlu0 %50, %v40
  %v52 = vpop.permute.xlu0 %51
  %55 = vset.pattern.permute.xlu0 0
  %56 = vperm.xlu0 %55, %v41
  %v57 = vpop.permute.xlu0 %56
  %60 = vset.pattern.permute.xlu0 0
  %61 = vperm.xlu0 %60, %v42
  %v62 = vpop.permute.xlu0 %61
  %65 = vset.pattern.permute.xlu0 0
  %66 = vperm.xlu0 %65, %v43
  %v67 = vpop.permute.xlu0 %66
  %70 = vset.pattern.permute.xlu0 0
  %71 = vperm.xlu0 %70, %v44
  %v72 = vpop.permute.xlu0 %71
  %75 = vset.pattern.permute.xlu0 0
  %76 = vperm.xlu0 %75, %v45
  %v77 = vpop.permute.xlu0 %76
  %80 = vset.pattern.permute.xlu0 0
  %81 = vperm.xlu0 %80, %v46
  %v82 = vpop.permute.xlu0 %81
  %85 = vset.pattern.permute.xlu0 0
  %86 = vperm.xlu0 %85, %v47
  %v87 = vpop.permute.xlu0 %86
  %v89 = vmul.f32 %v32, %v52
  %v90 = vmul.f32 %v33, %v57
  %v91 = vmul.f32 %v34, %v62
  %v92 = vmul.f32 %v35, %v67
  %v93 = vmul.f32 %v36, %v72
  %v94 = vmul.f32 %v37, %v77
  %v95 = vmul.f32 %v38, %v82
  %v96 = vmul.f32 %v39, %v87
  %vm97 = vcmask 261120
  %v98 = vsel %vm97, %v89, 0.0
  %v99 = vrot.slane %v98, 4
  %v100 = vadd.f32 %v98, %v99
  %v101 = vrot.slane %v100, 2
  %v102 = vadd.f32 %v100, %v101
  %v103 = vrot.slane %v102, 1
  %v104 = vadd.f32 %v102, %v103
  %v105 = vsel %vm97, %v90, 0.0
  %v106 = vrot.slane %v105, 4
  %v107 = vadd.f32 %v105, %v106
  %v108 = vrot.slane %v107, 2
  %v109 = vadd.f32 %v107, %v108
  %v110 = vrot.slane %v109, 1
  %v111 = vadd.f32 %v109, %v110
  %v112 = vsel %vm97, %v91, 0.0
  %v113 = vrot.slane %v112, 4
  %v114 = vadd.f32 %v112, %v113
  %v115 = vrot.slane %v114, 2
  %v116 = vadd.f32 %v114, %v115
  %v117 = vrot.slane %v116, 1
  %v118 = vadd.f32 %v116, %v117
  %v119 = vsel %vm97, %v92, 0.0
  %v120 = vrot.slane %v119, 4
  %v121 = vadd.f32 %v119, %v120
  %v122 = vrot.slane %v121, 2
  %v123 = vadd.f32 %v121, %v122
  %v124 = vrot.slane %v123, 1
  %v125 = vadd.f32 %v123, %v124
  %v126 = vsel %vm97, %v93, 0.0
  %v127 = vrot.slane %v126, 4
  %v128 = vadd.f32 %v126, %v127
  %v129 = vrot.slane %v128, 2
  %v130 = vadd.f32 %v128, %v129
  %v131 = vrot.slane %v130, 1
  %v132 = vadd.f32 %v130, %v131
  %v133 = vsel %vm97, %v94, 0.0
  %v134 = vrot.slane %v133, 4
  %v135 = vadd.f32 %v133, %v134
  %v136 = vrot.slane %v135, 2
  %v137 = vadd.f32 %v135, %v136
  %v138 = vrot.slane %v137, 1
  %v139 = vadd.f32 %v137, %v138
  %v140 = vsel %vm97, %v95, 0.0
  %v141 = vrot.slane %v140, 4
  %v142 = vadd.f32 %v140, %v141
  %v143 = vrot.slane %v142, 2
  %v144 = vadd.f32 %v142, %v143
  %v145 = vrot.slane %v144, 1
  %v146 = vadd.f32 %v144, %v145
  %v147 = vsel %vm97, %v96, 0.0
  %v148 = vrot.slane %v147, 4
  %v149 = vadd.f32 %v147, %v148
  %v150 = vrot.slane %v149, 2
  %v151 = vadd.f32 %v149, %v150
  %v152 = vrot.slane %v151, 1
  %v153 = vadd.f32 %v151, %v152
  %vm162 = vcmask 1041409
  %v163 = vsel %vm162, %v111, %v104
  %vm164 = vcmask 1042434
  %v165 = vsel %vm164, %v118, %v163
  %vm166 = vcmask 1043459
  %v167 = vsel %vm166, %v125, %v165
  %vm168 = vcmask 1044484
  %v169 = vsel %vm168, %v132, %v167
  %vm170 = vcmask 1045509
  %v171 = vsel %vm170, %v139, %v169
  %vm172 = vcmask 1046534
  %v173 = vsel %vm172, %v146, %v171
  %vm174 = vcmask 1047559
  %v175 = vsel %vm174, %v153, %v173
  %v177 = vadd.f32 %v48, %v175
  %178 = vst.msk [vmem:[#allocation2] sm:$0xff] %vm97, %v177
  // Predicated region
  $region34: #{tpu_custom_call.1} parent=0 // pred_check
    %p179 = pneg %p26
  $region35: #{tpu_custom_call.1} parent=0 // pred_check_branch
    %181 = sbr.rel (%p179) target = $region37
  $region36: #{tpu_custom_call.1} parent=0 // pred_region
    %v182 = vld [vmem:[#allocation2] sm:$0xff]
    %v183 = vld [vmem:[%s2] sm:$0xff]
    %185 = vset.pattern.permute.xlu0 0
    %186 = vperm.xlu0 %185, %v183
    %v187 = vpop.permute.xlu0 %186
    %v189 = vmul.f32 %v182, %v187
    %v190 = vsel %vm97, %v189, 0.0
    %191 = vadd.xlane.f32.xlu0 %v190
    %v192 = vpop.xlane.xlu0 %191
    %v193 = vrcp.pop 32.0
    %v194 = vmul.f32 %v192, %v193
    %v195 = vsub.f32 %v189, %v194
    %v196 = vmul.f32 %v195, %v195
    %v197 = vsel %vm97, %v196, 0.0
    %198 = vadd.xlane.f32.xlu0 %v197
    %v199 = vpop.xlane.xlu0 %198
    %v200 = vmul.f32 %v199, %v193
    %v201 = vadd.f32 %v200, 1e-05
    %v202 = vrsqrt.pop %v201
    %v203 = vmul.f32 %v195, %v202
    %v204 = vld [vmem:[%s3] sm:$0x1]
    %v206 = vlaneseq
    %v207 = vshrl.u32 %v206, 7
    %v208 = vsub.s32 0, %v207
    %v209 = vrot.slane %v204, %v208
    %v211 = vmul.f32 %v203, %v209
    %v212 = vld [vmem:[%s4] sm:$0x1]
    %v214 = vlaneseq
    %v215 = vshrl.u32 %v214, 7
    %v216 = vsub.s32 0, %v215
    %v217 = vrot.slane %v212, %v216
    %v219 = vadd.f32 %v211, %v217
    %v220 = vld [vmem:[%s5] sm:$0xff]
    %v221 = vld [vmem:[%s5 + $0x8] sm:$0xff]
    %v222 = vld [vmem:[%s5 + $0x10] sm:$0xff]
    %v223 = vld [vmem:[%s5 + $0x18] sm:$0xff]
    %v224 = vld [vmem:[%s6] sm:$0x1]
    %v226 = vlaneseq
    %v227 = vshrl.u32 %v226, 7
    %v228 = vsub.s32 0, %v227
    %v229 = vrot.slane %v224, %v228
    %v232 = vsel %vm97, %v219, 0
    %234 = vmatprep.subr.mxu0 0.0
    %235 = vmatpush1.msra.mxu0 0.0
    %236 = vmatprep.subr.mxu0 0.0
    %237 = vmatpush1.msra.mxu0 0.0
    %238 = vmatprep.subr.mxu0 0.0
    %239 = vmatpush1.msra.mxu0 0.0
    %240 = vmatprep.subr.mxu0 0.0
    %241 = vmatpush1.msra.mxu0 0.0
    %242 = vmatprep.subr.mxu0 0.0
    %243 = vmatpush1.msra.mxu0 0.0
    %244 = vmatprep.subr.mxu0 0.0
    %245 = vmatpush1.msra.mxu0 0.0
    %246 = vmatprep.subr.mxu0 0.0
    %247 = vmatpush1.msra.mxu0 0.0
    %248 = vmatprep.subr.mxu0 0.0
    %249 = vmatpush1.msra.mxu0 0.0
    %250 = vmatprep.subr.mxu0 0.0
    %251 = vmatpush1.msra.mxu0 0.0
    %252 = vmatprep.subr.mxu0 0.0
    %253 = vmatpush1.msra.mxu0 0.0
    %254 = vmatprep.subr.mxu0 0.0
    %255 = vmatpush1.msra.mxu0 0.0
    %256 = vmatprep.subr.mxu0 0.0
    %257 = vmatpush1.msra.mxu0 0.0
    %258 = vmatprep.subr.mxu0 0.0
    %259 = vmatpush1.msra.mxu0 %v223
    %260 = vmatprep.subr.mxu0 0.0
    %261 = vmatpush1.msra.mxu0 %v222
    %262 = vmatprep.subr.mxu0 0.0
    %263 = vmatpush1.msra.mxu0 %v221
    %264 = vmatprep.subr.mxu0 0.0
    %265 = vmatpush1.msra.mxu0 %v220
    %266 = vmatprep.subr.mxu0 0.0
    %267 = vmatpush2.msra.mxu0 0.0
    %268 = vmatprep.subr.mxu0 0.0
    %269 = vmatpush2.msra.mxu0 0.0
    %270 = vmatprep.subr.mxu0 0.0
    %271 = vmatpush2.msra.mxu0 0.0
    %272 = vmatprep.subr.mxu0 0.0
    %273 = vmatpush2.msra.mxu0 0.0
    %274 = vmatprep.subr.mxu0 0.0
    %275 = vmatpush2.msra.mxu0 0.0
    %276 = vmatprep.subr.mxu0 0.0
    %277 = vmatpush2.msra.mxu0 0.0
    %278 = vmatprep.subr.mxu0 0.0
    %279 = vmatpush2.msra.mxu0 0.0
    %280 = vmatprep.subr.mxu0 0.0
    %281 = vmatpush2.msra.mxu0 0.0
    %282 = vmatprep.subr.mxu0 0.0
    %283 = vmatpush2.msra.mxu0 0.0
    %284 = vmatprep.subr.mxu0 0.0
    %285 = vmatpush2.msra.mxu0 0.0
    %286 = vmatprep.subr.mxu0 0.0
    %287 = vmatpush2.msra.mxu0 0.0
    %288 = vmatprep.subr.mxu0 0.0
    %289 = vmatpush2.msra.mxu0 0.0
    %290 = vmatprep.subr.mxu0 0.0
    %291 = vmatpush2.msra.mxu0 0.0
    %292 = vmatprep.subr.mxu0 0.0
    %293 = vmatpush2.msra.mxu0 0.0
    %294 = vmatprep.subr.mxu0 0.0
    %295 = vmatpush2.msra.mxu0 0.0
    %296 = vmatprep.subr.mxu0 0.0
    %297 = vmatpush2.msra.mxu0 0.0
    %298 = vmatprep.mubr.f32.mxu0 0.0
    %299 = vmatmul.mubr.f32.gmra.mxu0 %v232
    %v300 = vpop.f32.mrf.mxu0
    %v301 = vadd.f32 %v229, %v300
    %v302 = vpop.f32.mrf.mxu0
    %303 = vdwg.mxu0
    %vm304 = vcmask 31744
    %305 = vst.msk [vmem:[%s7] sm:$0xff] %vm304, %v301
  $region37: #{tpu_custom_call.1} parent=0 // pred_fallthru
    _
  // Predicated region
  $region38: #{tpu_custom_call.1} parent=0 // pred_check
    _
  $region39: #{tpu_custom_call.1} parent=0 // pred_check_branch
    %307 = sbr.rel (0) target = $region41
  $region40: #{tpu_custom_call.1} parent=0 // pred_region
    _
  $region41: #{tpu_custom_call.1} parent=0 // pred_fallthru
    _
  // Predicated region
  $region42: #{tpu_custom_call.1} parent=0 // pred_check
    _
  $region43: #{tpu_custom_call.1} parent=0 // pred_check_branch
    %309 = sbr.rel (0) target = $region45
  $region44: #{tpu_custom_call.1} parent=0 // pred_region
    _
  $region45: #{tpu_custom_call.1} parent=0 // pred_fallthru
    _

</llo_original>
